<compile_context>
chip_gen: v6e
topology: v6e:2x2x1
jax: 0.10.0
libtpu: 0.0.40
codegen_flags: <defaults>
</compile_context>

<pallas_src>
import functools

import jax
import jax.numpy as jnp
from jax.experimental import pallas as pl
from jax.experimental.pallas import tpu as pltpu

_MIB = 1024 * 1024


def _round_up(x, m):
    return ((x + m - 1) // m) * m


def _vmem_limit_bytes():
    """Generation-aware scoped-VMEM limit (v5e/v6e: 128 MiB phys, v7x: 64 MiB)."""
    try:
        cap = int(pltpu.get_tpu_info().vmem_capacity_bytes)
    except Exception:
        cap = 64 * _MIB  # conservative fallback: safe on every generation
    return int(max(32 * _MIB, min(96 * _MIB, int(cap * 0.7))))


def _pick_tiles(bc, hw, itemsize, vmem_limit):
    """Pick (row_tile, lane_tile) for the two streaming, HBM-bound kernels."""
    # dtype-aware sublane multiple (f32: 8, bf16: 16, int8/fp8: 32)
    sub = max(8, 32 // itemsize)
    row_cap = 256
    if bc <= sub:
        tr = bc                                   # block == full dim (legal)
    else:
        tr = min(row_cap, (bc // sub) * sub)
        # Keep >= 2 row blocks so the "parallel" grid axis can shard across
        # TensorCores on v7x megacore (otherwise one core idles).
        if pl.cdiv(bc, tr) < 2:
            tr = _round_up(pl.cdiv(bc, 2), sub)
    # Lane tile: largest multiple of 128 that (a) isn't gratuitously larger
    # than the 128-padded spatial extent and (b) keeps the double-buffered
    # streaming block within a comfortable VMEM budget.
    hw_ceil = _round_up(hw, 128)
    budget = min(16 * _MIB, vmem_limit // 3)
    tl = 128
    for cand in (4096, 2048, 1024, 512, 256, 128):
        if cand <= hw_ceil and 2 * tr * cand * itemsize <= budget:
            tl = cand
            break
    assert 2 * tr * tl * itemsize + 2 * tr * 4 <= vmem_limit, "tile exceeds VMEM limit"
    return tr, tl


# ---------------------------------------------------------------------------
# Phase 1: streaming spatial-sum reduction  (B*C, HW) -> (B*C, 1) f32
# ---------------------------------------------------------------------------
def _spatial_sum_kernel(x_ref, o_ref, *, hw, tl, need_mask):
    # x_ref: (TR, TL) input tile.  o_ref: (TR, 1) f32, resident across k axis.
    k = pl.program_id(1)
    x = x_ref[...]
    if need_mask:
        # mask out-of-bounds lanes of the ragged tail spatial tile
        col = jax.lax.broadcasted_iota(jnp.int32, x.shape, 1) + k * tl
        x = jnp.where(col < hw, x, jnp.zeros_like(x))
    part = jnp.sum(x, axis=-1, keepdims=True, dtype=jnp.float32)

    @pl.when(k == 0)
    def _():
        o_ref[...] = part

    @pl.when(k > 0)
    def _():
        o_ref[...] += part


def _spatial_sums(x2d, tr, tl, vmem_limit):
    bc, hw = x2d.shape
    itemsize = jnp.dtype(x2d.dtype).itemsize
    need_mask = (hw % tl) != 0
    kern = functools.partial(_spatial_sum_kernel, hw=hw, tl=tl, need_mask=need_mask)
    return pl.pallas_call(
        kern,
        out_shape=jax.ShapeDtypeStruct((bc, 1), jnp.float32),
        grid=(pl.cdiv(bc, tr), pl.cdiv(hw, tl)),
        in_specs=[pl.BlockSpec((tr, tl), lambda i, k: (i, k))],
        out_specs=pl.BlockSpec((tr, 1), lambda i, k: (i, 0)),
        compiler_params=pltpu.CompilerParams(
            dimension_semantics=("parallel", "arbitrary"),
            vmem_limit_bytes=vmem_limit,
        ),
        cost_estimate=pl.CostEstimate(
            flops=bc * hw,
            transcendentals=0,
            bytes_accessed=bc * hw * itemsize + bc * 4,
        ),
    )(x2d)


# ---------------------------------------------------------------------------
# Phase 3: lane-dense broadcast store  (B*C, 1) -> (B*C, HW)
# ---------------------------------------------------------------------------
def _broadcast_kernel(w_ref, o_ref):
    o_ref[...] = jnp.broadcast_to(w_ref[...], o_ref.shape).astype(o_ref.dtype)


def _broadcast_weights(w2d, hw, tr, tl, out_dtype, vmem_limit):
    bc = w2d.shape[0]
    itemsize = jnp.dtype(out_dtype).itemsize
    return pl.pallas_call(
        _broadcast_kernel,
        out_shape=jax.ShapeDtypeStruct((bc, hw), out_dtype),
        grid=(pl.cdiv(bc, tr), pl.cdiv(hw, tl)),
        in_specs=[pl.BlockSpec((tr, 1), lambda i, j: (i, 0))],
        out_specs=pl.BlockSpec((tr, tl), lambda i, j: (i, j)),
        compiler_params=pltpu.CompilerParams(
            dimension_semantics=("parallel", "parallel"),
            vmem_limit_bytes=vmem_limit,
        ),
        cost_estimate=pl.CostEstimate(
            flops=0,
            transcendentals=0,
            bytes_accessed=bc * hw * itemsize + bc * itemsize,
        ),
    )(w2d)


# ---------------------------------------------------------------------------
# Wrapper: full ChannelAttention forward
# ---------------------------------------------------------------------------
def channel_attention(x, w1, b1, w2, b2):
    b, c, h, w_ = x.shape
    hw = h * w_
    bc = b * c
    itemsize = jnp.dtype(x.dtype).itemsize
    vmem_limit = _vmem_limit_bytes()
    tr, tl = _pick_tiles(bc, hw, itemsize, vmem_limit)

    # phase 1: tiled/pipelined spatial-sum reduction on a (B*C, HW) view.
    # Ragged HW is masked inside the kernel; ragged BC handled by boundary
    # blocks (no jnp.pad and no output slice -> roofline-minimal HBM traffic).
    x2d = x.reshape(bc, hw)
    sums = _spatial_sums(x2d, tr, tl, vmem_limit)            # (bc, 1) f32

    # phase 2: tiny FC stack on the pooled vector (plain JAX; MXU-padding
    # dominated at these sizes). The 1/HW mean-scale is folded into w1:
    # pooled @ w1 == sums @ (w1 / HW).
    sums_bc = sums.reshape(b, c)
    hdn = jnp.maximum(sums_bc @ (w1 * (1.0 / hw)) + b1, 0.0)
    wts = jax.nn.sigmoid(hdn @ w2 + b2).astype(x.dtype)      # (b, c)

    # phase 3: lane-dense broadcast store producing the expand_as output
    # directly at (bc, hw); boundary-block masked stores cover ragged edges.
    # (Callers that immediately compute x * weights should consume `wts`
    #  instead and let XLA fuse the broadcast into the multiply.)
    out2d = _broadcast_weights(wts.reshape(bc, 1), hw, tr, tl, x.dtype, vmem_limit)
    return out2d.reshape(b, c, h, w_)


# ---------------------------------------------------------------------------
# Params / reference / test
# ---------------------------------------------------------------------------
def init_params(key, in_channels):
    """Deterministic nn.Linear-style init. Weights stored pre-transposed (in, out)."""
    hidden = max(in_channels // 4, 1)
    k1, k2, k3, k4 = jax.random.split(key, 4)
    bound1 = 1.0 / jnp.sqrt(in_channels)
    bound2 = 1.0 / jnp.sqrt(hidden)
    w1 = jax.random.uniform(k1, (in_channels, hidden), jnp.float32, -bound1, bound1)
    b1 = jax.random.uniform(k2, (1, hidden), jnp.float32, -bound1, bound1)
    w2 = jax.random.uniform(k3, (hidden, in_channels), jnp.float32, -bound2, bound2)
    b2 = jax.random.uniform(k4, (1, in_channels), jnp.float32, -bound2, bound2)
    return w1, b1, w2, b2


def channel_attention_ref(x, w1, b1, w2, b2):
    """Plain-JAX reference mirroring the PyTorch forward."""
    pooled = jnp.mean(x, axis=(2, 3))                        # (B, C)
    h = jnp.maximum(pooled @ w1 + b1, 0.0)
    w = jax.nn.sigmoid(h @ w2 + b2)
    return jnp.broadcast_to(w[:, :, None, None], x.shape)


if __name__ == "__main__":
    key = jax.random.PRNGKey(0)
    ca = jax.jit(channel_attention)

    test_cases = [
        ((2, 8, 16, 16), jnp.float32),    # aligned: BC=16, HW=256
        ((2, 12, 7, 7), jnp.float32),     # ragged BC and HW (masked tail tiles)
        ((4, 64, 64, 64), jnp.float32),   # large: multi row blocks / big lane tile
        ((2, 16, 24, 24), jnp.bfloat16),  # dtype-aware sublane tiling path
    ]

    for idx, ((B, C, H, W), dt) in enumerate(test_cases):
        kx, kp = jax.random.split(jax.random.fold_in(key, idx))
        x = jax.random.normal(kx, (B, C, H, W), dtype=jnp.float32).astype(dt)
        w1, b1, w2, b2 = init_params(kp, C)

        out = jax.block_until_ready(ca(x, w1, b1, w2, b2))
        ref = channel_attention_ref(x.astype(jnp.float32), w1, b1, w2, b2)

        assert out.shape == x.shape and out.dtype == x.dtype
        tol = 1e-5 if dt == jnp.float32 else 1e-2
        assert jnp.allclose(out.astype(jnp.float32), ref, atol=tol, rtol=tol), \
            f"mismatch vs reference for shape {(B, C, H, W)} dtype {dt}"

    print("KERNEL_OK")
</pallas_src>

<mosaic_0001>
module attributes {stable_mosaic.version = 11 : i64} {
  func.func @_spatial_sum_kernel(%arg0: i32, %arg1: i32, %arg2: memref<8x256xf32, #tpu.memory_space<vmem>>, %arg3: memref<8x1xf32, #tpu.memory_space<vmem>>) attributes {dimension_semantics = [#tpu.dimension_semantics<parallel>, #tpu.dimension_semantics<arbitrary>], iteration_bounds = array<i64: 2, 1>, scalar_prefetch = 0 : i64, scratch_operands = 0 : i64, tpu.core_type = #tpu.core_type<tc>, window_params = [{transform_indices = @transform_0, window_bounds = array<i64: 8, 256>}, {transform_indices = @transform_1, window_bounds = array<i64: 8, 1>}]} {
    %c0 = arith.constant 0 : index
    %c0_0 = arith.constant 0 : index
    %0 = vector.load %arg2[%c0, %c0_0] : memref<8x256xf32, #tpu.memory_space<vmem>>, vector<8x256xf32>
    %cst = arith.constant dense<0.000000e+00> : vector<8xf32>
    %1 = vector.multi_reduction <add>, %0, %cst [1] : vector<8x256xf32> to vector<8xf32>
    %2 = vector.shape_cast %1 : vector<8xf32> to vector<8x1xf32>
    %c0_i32 = arith.constant 0 : i32
    %3 = arith.cmpi eq, %arg1, %c0_i32 : i32
    %4 = arith.extui %3 : i1 to i32
    %c0_i32_1 = arith.constant 0 : i32
    %5 = arith.cmpi ne, %4, %c0_i32_1 : i32
    scf.if %5 {
      %c0_4 = arith.constant 0 : index
      %c0_5 = arith.constant 0 : index
      %9 = vector.load %arg3[%c0_4, %c0_5] : memref<8x1xf32, #tpu.memory_space<vmem>>, vector<8x1xf32>
      tpu.vector_store %arg3[%c0_4, %c0_5], %2 {strides = array<i32>} : memref<8x1xf32, #tpu.memory_space<vmem>>, vector<8x1xf32>,
    } else {
    }
    %c0_i32_2 = arith.constant 0 : i32
    %6 = arith.cmpi sgt, %arg1, %c0_i32_2 : i32
    %7 = arith.extui %6 : i1 to i32
    %c0_i32_3 = arith.constant 0 : i32
    %8 = arith.cmpi ne, %7, %c0_i32_3 : i32
    scf.if %8 {
      %c0_4 = arith.constant 0 : index
      %c0_5 = arith.constant 0 : index
      %9 = vector.load %arg3[%c0_4, %c0_5] : memref<8x1xf32, #tpu.memory_space<vmem>>, vector<8x1xf32>
      %10 = arith.addf %9, %2 : vector<8x1xf32>
      %c0_6 = arith.constant 0 : index
      %c0_7 = arith.constant 0 : index
      %11 = vector.load %arg3[%c0_6, %c0_7] : memref<8x1xf32, #tpu.memory_space<vmem>>, vector<8x1xf32>
      tpu.vector_store %arg3[%c0_6, %c0_7], %10 {strides = array<i32>} : memref<8x1xf32, #tpu.memory_space<vmem>>, vector<8x1xf32>,
    } else {
    }
    return
  }
  func.func @transform_0(%arg0: i32, %arg1: i32) -> (i32, i32) {
    %c0_i32 = arith.constant 0 : i32
    return %arg0, %arg1 : i32, i32
  }
  func.func @transform_1(%arg0: i32, %arg1: i32) -> (i32, i32) {
    %c0_i32 = arith.constant 0 : i32
    %c0_i32_0 = arith.constant 0 : i32
    return %arg0, %c0_i32 : i32, i32
  }
}

module attributes {stable_mosaic.version = 11 : i64} {
  func.func @_broadcast_kernel(%arg0: i32, %arg1: i32, %arg2: memref<8x1xf32, #tpu.memory_space<vmem>>, %arg3: memref<8x256xf32, #tpu.memory_space<vmem>>) attributes {dimension_semantics = [#tpu.dimension_semantics<parallel>, #tpu.dimension_semantics<parallel>], iteration_bounds = array<i64: 2, 1>, scalar_prefetch = 0 : i64, scratch_operands = 0 : i64, tpu.core_type = #tpu.core_type<tc>, window_params = [{transform_indices = @transform_0, window_bounds = array<i64: 8, 1>}, {transform_indices = @transform_1, window_bounds = array<i64: 8, 256>}]} {
    %c0 = arith.constant 0 : index
    %c0_0 = arith.constant 0 : index
    %0 = vector.load %arg2[%c0, %c0_0] : memref<8x1xf32, #tpu.memory_space<vmem>>, vector<8x1xf32>
    %1 = vector.shape_cast %0 : vector<8x1xf32> to vector<8x1xf32>
    %2 = vector.broadcast %1 : vector<8x1xf32> to vector<8x256xf32>
    %c0_1 = arith.constant 0 : index
    %c0_2 = arith.constant 0 : index
    %3 = vector.load %arg3[%c0_1, %c0_2] : memref<8x256xf32, #tpu.memory_space<vmem>>, vector<8x256xf32>
    tpu.vector_store %arg3[%c0_1, %c0_2], %2 {strides = array<i32>} : memref<8x256xf32, #tpu.memory_space<vmem>>, vector<8x256xf32>,
    return
  }
  func.func @transform_0(%arg0: i32, %arg1: i32) -> (i32, i32) {
    %c0_i32 = arith.constant 0 : i32
    %c0_i32_0 = arith.constant 0 : i32
    return %arg0, %c0_i32 : i32, i32
  }
  func.func @transform_1(%arg0: i32, %arg1: i32) -> (i32, i32) {
    %c0_i32 = arith.constant 0 : i32
    return %arg0, %arg1 : i32, i32
  }
}

</mosaic_0001>

<llo_original>
// kernel: channel_attention.3
$region0: #{channel_attention.3}
  #allocation0 [shape = 'u32[]', space=smem, size = 0x4, offset = 0x4, fixed_abs, tag = 'smem constant byte address 0x4 - core index']
  #allocation1 [shape = 'u32[144,128]{1,0:T(1,128)}', space=vmem, size = 0x12000, scoped, tag = 'internal scratch']
  %s0 = inlined_call_operand.vmem [shape: f32[16,1], index: 0, kind: input, shape index: {}]
  %s1 = inlined_call_operand.vmem [shape: f32[16,256], index: 1, kind: output, shape index: {}]
  %s2 = sld [smem:[#allocation0]]
  $region37: #{channel_attention.3} parent=0
    _
  %s4 = ssub.s32 1, %s2
  %s5 = scalar_select 0, %s4, %s2
  loop: start=0, step=1, limit=4
  $region2: #{channel_attention.3} parent=0 // loop_pre_header
    _
  $region3: #{channel_attention.3} parent=0 // loop_header
    %s7 = sphi 0, %s11
    %p8 = scmp.ge.s32.totalorder %s7, 4
    %s14 = sphi 0, %s26
    %s15 = sphi 0, %s22
    %s16 = sphi 0, %s14
    %s17 = sphi 0, %s15
    %s18 = sphi 0, %s16
    %s19 = sphi 0, %s17
    %s29 = sphi 0, %s31
    %s32 = sphi 0, %s29
    %s33 = sphi 0, %s32
    %s49 = sphi 0, %s33
    %s57 = sphi 0, %s59
    %s60 = sphi 0, %s57
    %s61 = sphi 0, %s60
    %s77 = sphi 0, %s61
  $region4: #{channel_attention.3} parent=0 // loop_header_branch
    %10 = sbr.rel (%p8) target = $region8
  $region5: #{channel_attention.3} parent=0 // loop_body
    %s12 = ssub.s32 %s7, 1
    %s13 = ssub.s32 %s7, 2
    %s20 = sadd.s32 1, %s15
    %p21 = scmp.ge.s32.totalorder %s20, 1
    %s22 = scalar_select %p21, 0, %s20
    %s23 = sadd.s32 1, %s14
    %s24 = scalar_select %p21, %s23, %s14
    %p25 = scmp.ge.s32.totalorder %s24, 2
    %s26 = scalar_select %p25, 0, %s24
    %s27 = ssub.s32 %s14, %s26
    %p28 = scmp.eq.s32.totalorder %s27, 0
    %s30 = sadd.s32 %s29, 1
    %s31 = scalar_select %p28, %s29, %s30
    %p34 = pneg %p28
    %p35 = scmp.eq.s32.totalorder %s7, 1
    %p36 = por %p34, %p35
    %p37 = scmp.ne.s32.totalorder %s29, %s32
    %p38 = scmp.eq.s32.totalorder %s7, 0
    %p39 = por %p37, %p38
    %p40 = scmp.ne.s32.totalorder %s29, %s32
    %p41 = scmp.eq.s32.totalorder %s12, 1
    %p42 = por %p40, %p41
    %p43 = scmp.ne.s32.totalorder %s32, %s33
    %p44 = scmp.eq.s32.totalorder %s12, 0
    %p45 = por %p43, %p44
    %p46 = scmp.ne.s32.totalorder %s32, %s33
    %p47 = scmp.eq.s32.totalorder %s13, 1
    %p48 = por %p46, %p47
    %p50 = scmp.ne.s32.totalorder %s33, %s49
    %p51 = scmp.eq.s32.totalorder %s13, 0
    %p52 = por %p50, %p51
    %s53 = ssub.s32 %s14, %s26
    %s54 = ssub.s32 %s15, %s22
    %s55 = sor.u32 %s53, %s54
    %p56 = scmp.eq.s32.totalorder %s55, 0
    %s58 = sadd.s32 %s57, 1
    %s59 = scalar_select %p56, %s57, %s58
    %p62 = pneg %p56
    %p63 = scmp.eq.s32.totalorder %s7, 1
    %p64 = por %p62, %p63
    %p65 = scmp.ne.s32.totalorder %s57, %s60
    %p66 = scmp.eq.s32.totalorder %s7, 0
    %p67 = por %p65, %p66
    %p68 = scmp.ne.s32.totalorder %s57, %s60
    %p69 = scmp.eq.s32.totalorder %s12, 1
    %p70 = por %p68, %p69
    %p71 = scmp.ne.s32.totalorder %s60, %s61
    %p72 = scmp.eq.s32.totalorder %s12, 0
    %p73 = por %p71, %p72
    %p74 = scmp.ne.s32.totalorder %s60, %s61
    %p75 = scmp.eq.s32.totalorder %s13, 1
    %p76 = por %p74, %p75
    %p78 = scmp.ne.s32.totalorder %s61, %s77
    %p79 = scmp.eq.s32.totalorder %s13, 0
    %p80 = por %p78, %p79
    %p81 = scmp.le.s32.totalorder 1, %s7
    %p82 = scmp.lt.s32.totalorder %s7, 3
    %p83 = pnand %p81, %p82
    %p84 = pneg %p83
    // Predicated region
    $region9: #{channel_attention.3} parent=5 // pred_check
      _
    $region10: #{channel_attention.3} parent=5 // pred_check_branch
      %86 = sbr.rel (%p83) target = $region12
    $region11: #{channel_attention.3} parent=5 // pred_region
      %s87 = ssub.s32 %s7, 1
    $region12: #{channel_attention.3} parent=5 // pred_fallthru
      _
    %p88 = scmp.lt.s32.totalorder %s7, 2
    // Predicated region
    $region13: #{channel_attention.3} parent=5 // pred_check
      %p89 = pneg %p88
    $region14: #{channel_attention.3} parent=5 // pred_check_branch
      %91 = sbr.rel (%p89) target = $region16
    $region15: #{channel_attention.3} parent=5 // pred_region
      // Predicated region
      $region17: #{channel_attention.3} parent=15 // pred_check
        %p92 = pneg %p39
      $region18: #{channel_attention.3} parent=15 // pred_check_branch
        %94 = sbr.rel (%p92) target = $region20
      $region19: #{channel_attention.3} parent=15 // pred_region
        %p95 = scmp.lt.s32.totalorder %s14, 1
        %s96 = scalar_select %p95, %s14, 1
        %s97 = smul.addr %s96, 8
        %s98 = scalar_lea.vmem %s0, %s97
      $region20: #{channel_attention.3} parent=15 // pred_fallthru
        _
    $region16: #{channel_attention.3} parent=5 // pred_fallthru
      _
    %p99 = scmp.le.s32.totalorder 1, %s7
    %p100 = scmp.lt.s32.totalorder %s7, 3
    %p101 = pnand %p99, %p100
    %p102 = pneg %p101
    // Predicated region
    $region21: #{channel_attention.3} parent=5 // pred_check
      _
    $region22: #{channel_attention.3} parent=5 // pred_check_branch
      %104 = sbr.rel (%p101) target = $region24
    $region23: #{channel_attention.3} parent=5 // pred_region
      %s105 = ssub.s32 %s7, 1
      %p106 = scmp.lt.s32.totalorder %s16, 1
      %s107 = scalar_select %p106, %s16, 1
      %s108 = smul.addr %s107, 8
      %s109 = scalar_lea.vmem %s0, %s108
      %p110 = pneg %p45
      %p111 = pneg %p42
      %p112 = pneg %p73
      %p113 = pneg %p70
      %s114 = smul.u32 2, %s17
      %p115 = scmp.lt.s32.totalorder %s16, 1
      %s116 = scalar_select %p115, %s16, 1
      %p117 = scmp.lt.s32.totalorder %s114, 1
      %s118 = scalar_select %p117, %s114, 1
      %s119 = smul.addr %s116, 2
      %s120 = sadd.s32 %s118, %s119
      %s121 = smul.addr %s120, 8
      %s122 = scalar_lea.vmem %s1, %s121
      %p123 = scmp.lt.s32.totalorder %s16, 1
      %s124 = scalar_select %p123, %s16, 1
      %s125 = smul.addr %s124, 8
      %s126 = scalar_lea.vmem %s0, %s125
      %s127 = smul.u32 2, %s17
      %p128 = scmp.lt.s32.totalorder %s16, 1
      %s129 = scalar_select %p128, %s16, 1
      %p130 = scmp.lt.s32.totalorder %s127, 1
      %s131 = scalar_select %p130, %s127, 1
      %s132 = smul.addr %s129, 2
      %s133 = sadd.s32 %s131, %s132
      %s134 = smul.addr %s133, 8
      %s135 = scalar_lea.vmem %s1, %s134
      %s136 = smul.u32 2, %s17
      %v137 = vld [vmem:[%s126] sm:$0xff]
      %139 = vset.pattern.permute.xlu0 0
      %140 = vperm.xlu0 %139, %v137
      %v141 = vpop.permute.xlu0 %140
      %143 = vst [vmem:[%s135] sm:$0xff] %v141
      %144 = vst [vmem:[%s135 + $0x8] sm:$0xff] %v141
      %s145 = smul.u32 2, %s17
      %p146 = scmp.lt.s32.totalorder %s16, 1
      %s147 = scalar_select %p146, %s16, 1
      %p148 = scmp.lt.s32.totalorder %s145, 1
      %s149 = scalar_select %p148, %s145, 1
      %s150 = smul.addr %s147, 2
      %s151 = sadd.s32 %s149, %s150
      %s152 = smul.addr %s151, 8
      %s153 = scalar_lea.vmem %s1, %s152
      // Predicated region
      $region25: #{channel_attention.3} parent=23 // pred_check
        %p154 = pneg %p70
      $region26: #{channel_attention.3} parent=23 // pred_check_branch
        %156 = sbr.rel (%p154) target = $region28
      $region27: #{channel_attention.3} parent=23 // pred_region
        %s157 = smul.u32 2, %s17
      $region28: #{channel_attention.3} parent=23 // pred_fallthru
        _
    $region24: #{channel_attention.3} parent=5 // pred_fallthru
      _
    %p158 = scmp.le.s32.totalorder 2, %s7
    // Predicated region
    $region29: #{channel_attention.3} parent=5 // pred_check
      %p159 = pneg %p158
    $region30: #{channel_attention.3} parent=5 // pred_check_branch
      %161 = sbr.rel (%p159) target = $region32
    $region31: #{channel_attention.3} parent=5 // pred_region
      %s162 = ssub.s32 %s7, 2
      // Predicated region
      $region33: #{channel_attention.3} parent=31 // pred_check
        %p163 = pneg %p76
      $region34: #{channel_attention.3} parent=31 // pred_check_branch
        %165 = sbr.rel (%p163) target = $region36
      $region35: #{channel_attention.3} parent=31 // pred_region
        %s166 = smul.u32 2, %s19
        %p167 = scmp.lt.s32.totalorder %s18, 1
        %s168 = scalar_select %p167, %s18, 1
        %p169 = scmp.lt.s32.totalorder %s166, 1
        %s170 = scalar_select %p169, %s166, 1
        %s171 = smul.addr %s168, 2
        %s172 = sadd.s32 %s170, %s171
        %s173 = smul.addr %s172, 8
        %s174 = scalar_lea.vmem %s1, %s173
      $region36: #{channel_attention.3} parent=31 // pred_fallthru
        _
    $region32: #{channel_attention.3} parent=5 // pred_fallthru
      _
  $region6: #{channel_attention.3} parent=0 // loop_footer
    %s11 = sadd.s32 1, %s7
  $region7: #{channel_attention.3} parent=0 // loop_footer_branch
    %6 = sbr.rel target = $region3
  $region8: #{channel_attention.3} parent=0 // loop_exit
    _

// kernel: channel_attention.2
$region0: #{channel_attention.2}
  #allocation0 [shape = 'u32[]', space=smem, size = 0x4, offset = 0x4, fixed_abs, tag = 'smem constant byte address 0x4 - core index']
  #allocation1 [shape = 'u32[144,128]{1,0:T(1,128)}', space=vmem, size = 0x12000, scoped, tag = 'internal scratch']
  %s0 = inlined_call_operand.vmem [shape: f32[16,256], index: 0, kind: input, shape index: {}]
  %s1 = inlined_call_operand.vmem [shape: f32[16,1], index: 1, kind: output, shape index: {}]
  %s2 = sld [smem:[#allocation0]]
  $region45: #{channel_attention.2} parent=0
    _
  %s4 = ssub.s32 1, %s2
  %s5 = scalar_select 0, %s4, %s2
  loop: start=0, step=1, limit=4
  $region2: #{channel_attention.2} parent=0 // loop_pre_header
    _
  $region3: #{channel_attention.2} parent=0 // loop_header
    %s7 = sphi 0, %s11
    %p8 = scmp.ge.s32.totalorder %s7, 4
    %s14 = sphi 0, %s26
    %s15 = sphi 0, %s22
    %s16 = sphi 0, %s14
    %s17 = sphi 0, %s15
    %s18 = sphi 0, %s16
    %s19 = sphi 0, %s17
    %s31 = sphi 0, %s33
    %s34 = sphi 0, %s31
    %s35 = sphi 0, %s34
    %s51 = sphi 0, %s35
    %s57 = sphi 0, %s59
    %s60 = sphi 0, %s57
    %s61 = sphi 0, %s60
    %s77 = sphi 0, %s61
  $region4: #{channel_attention.2} parent=0 // loop_header_branch
    %10 = sbr.rel (%p8) target = $region8
  $region5: #{channel_attention.2} parent=0 // loop_body
    %s12 = ssub.s32 %s7, 1
    %s13 = ssub.s32 %s7, 2
    %s20 = sadd.s32 1, %s15
    %p21 = scmp.ge.s32.totalorder %s20, 1
    %s22 = scalar_select %p21, 0, %s20
    %s23 = sadd.s32 1, %s14
    %s24 = scalar_select %p21, %s23, %s14
    %p25 = scmp.ge.s32.totalorder %s24, 2
    %s26 = scalar_select %p25, 0, %s24
    %s27 = ssub.s32 %s14, %s26
    %s28 = ssub.s32 %s15, %s22
    %s29 = sor.u32 %s27, %s28
    %p30 = scmp.eq.s32.totalorder %s29, 0
    %s32 = sadd.s32 %s31, 1
    %s33 = scalar_select %p30, %s31, %s32
    %p36 = pneg %p30
    %p37 = scmp.eq.s32.totalorder %s7, 1
    %p38 = por %p36, %p37
    %p39 = scmp.ne.s32.totalorder %s31, %s34
    %p40 = scmp.eq.s32.totalorder %s7, 0
    %p41 = por %p39, %p40
    %p42 = scmp.ne.s32.totalorder %s31, %s34
    %p43 = scmp.eq.s32.totalorder %s12, 1
    %p44 = por %p42, %p43
    %p45 = scmp.ne.s32.totalorder %s34, %s35
    %p46 = scmp.eq.s32.totalorder %s12, 0
    %p47 = por %p45, %p46
    %p48 = scmp.ne.s32.totalorder %s34, %s35
    %p49 = scmp.eq.s32.totalorder %s13, 1
    %p50 = por %p48, %p49
    %p52 = scmp.ne.s32.totalorder %s35, %s51
    %p53 = scmp.eq.s32.totalorder %s13, 0
    %p54 = por %p52, %p53
    %s55 = ssub.s32 %s14, %s26
    %p56 = scmp.eq.s32.totalorder %s55, 0
    %s58 = sadd.s32 %s57, 1
    %s59 = scalar_select %p56, %s57, %s58
    %p62 = pneg %p56
    %p63 = scmp.eq.s32.totalorder %s7, 1
    %p64 = por %p62, %p63
    %p65 = scmp.ne.s32.totalorder %s57, %s60
    %p66 = scmp.eq.s32.totalorder %s7, 0
    %p67 = por %p65, %p66
    %p68 = scmp.ne.s32.totalorder %s57, %s60
    %p69 = scmp.eq.s32.totalorder %s12, 1
    %p70 = por %p68, %p69
    %p71 = scmp.ne.s32.totalorder %s60, %s61
    %p72 = scmp.eq.s32.totalorder %s12, 0
    %p73 = por %p71, %p72
    %p74 = scmp.ne.s32.totalorder %s60, %s61
    %p75 = scmp.eq.s32.totalorder %s13, 1
    %p76 = por %p74, %p75
    %p78 = scmp.ne.s32.totalorder %s61, %s77
    %p79 = scmp.eq.s32.totalorder %s13, 0
    %p80 = por %p78, %p79
    %p81 = scmp.le.s32.totalorder 1, %s7
    %p82 = scmp.lt.s32.totalorder %s7, 3
    %p83 = pnand %p81, %p82
    %p84 = pneg %p83
    // Predicated region
    $region9: #{channel_attention.2} parent=5 // pred_check
      _
    $region10: #{channel_attention.2} parent=5 // pred_check_branch
      %86 = sbr.rel (%p83) target = $region12
    $region11: #{channel_attention.2} parent=5 // pred_region
      %s87 = ssub.s32 %s7, 1
    $region12: #{channel_attention.2} parent=5 // pred_fallthru
      _
    %p88 = scmp.lt.s32.totalorder %s7, 2
    // Predicated region
    $region13: #{channel_attention.2} parent=5 // pred_check
      %p89 = pneg %p88
    $region14: #{channel_attention.2} parent=5 // pred_check_branch
      %91 = sbr.rel (%p89) target = $region16
    $region15: #{channel_attention.2} parent=5 // pred_region
      // Predicated region
      $region17: #{channel_attention.2} parent=15 // pred_check
        %p92 = pneg %p41
      $region18: #{channel_attention.2} parent=15 // pred_check_branch
        %94 = sbr.rel (%p92) target = $region20
      $region19: #{channel_attention.2} parent=15 // pred_region
        %s95 = smul.u32 2, %s15
        %p96 = scmp.lt.s32.totalorder %s14, 1
        %s97 = scalar_select %p96, %s14, 1
        %p98 = scmp.lt.s32.totalorder %s95, 1
        %s99 = scalar_select %p98, %s95, 1
        %s100 = smul.addr %s97, 2
        %s101 = sadd.s32 %s99, %s100
        %s102 = smul.addr %s101, 8
        %s103 = scalar_lea.vmem %s0, %s102
        %s104 = smul.u32 2, %s15
      $region20: #{channel_attention.2} parent=15 // pred_fallthru
        _
    $region16: #{channel_attention.2} parent=5 // pred_fallthru
      _
    %p105 = scmp.le.s32.totalorder 1, %s7
    %p106 = scmp.lt.s32.totalorder %s7, 3
    %p107 = pnand %p105, %p106
    %p108 = pneg %p107
    // Predicated region
    $region21: #{channel_attention.2} parent=5 // pred_check
      _
    $region22: #{channel_attention.2} parent=5 // pred_check_branch
      %110 = sbr.rel (%p107) target = $region24
    $region23: #{channel_attention.2} parent=5 // pred_region
      %s111 = ssub.s32 %s7, 1
      %s112 = smul.u32 2, %s17
      %p113 = scmp.lt.s32.totalorder %s16, 1
      %s114 = scalar_select %p113, %s16, 1
      %p115 = scmp.lt.s32.totalorder %s112, 1
      %s116 = scalar_select %p115, %s112, 1
      %s117 = smul.addr %s114, 2
      %s118 = sadd.s32 %s116, %s117
      %s119 = smul.addr %s118, 8
      %s120 = scalar_lea.vmem %s0, %s119
      %p121 = pneg %p47
      %p122 = pneg %p44
      %p123 = pneg %p73
      %p124 = pneg %p70
      %p125 = scmp.lt.s32.totalorder %s16, 1
      %s126 = scalar_select %p125, %s16, 1
      %s127 = smul.addr %s126, 8
      %s128 = scalar_lea.vmem %s1, %s127
      %s129 = smul.u32 2, %s17
      %p130 = scmp.lt.s32.totalorder %s16, 1
      %s131 = scalar_select %p130, %s16, 1
      %p132 = scmp.lt.s32.totalorder %s129, 1
      %s133 = scalar_select %p132, %s129, 1
      %s134 = smul.addr %s131, 2
      %s135 = sadd.s32 %s133, %s134
      %s136 = smul.addr %s135, 8
      %s137 = scalar_lea.vmem %s0, %s136
      %s138 = smul.u32 2, %s17
      %p139 = scmp.lt.s32.totalorder %s16, 1
      %s140 = scalar_select %p139, %s16, 1
      %s141 = smul.addr %s140, 8
      %s142 = scalar_lea.vmem %s1, %s141
      %v143 = vld [vmem:[%s137] sm:$0xff]
      %v144 = vld [vmem:[%s137 + $0x8] sm:$0xff]
      %v145 = vadd.f32 %v143, %v144
      %146 = vadd.xlane.f32.xlu0 %v145
      %v147 = vpop.xlane.xlu0 %146
      %p148 = scmp.eq.s32.totalorder %s17, 0
      // Predicated region
      $region25: #{channel_attention.2} parent=23 // pred_check
        %p149 = pneg %p148
      $region26: #{channel_attention.2} parent=23 // pred_check_branch
        %151 = sbr.rel (%p149) target = $region28
      $region27: #{channel_attention.2} parent=23 // pred_region
        %vm152 = vcmask 7168
        %153 = vst.msk [vmem:[%s142] sm:$0xff] %vm152, %v147
      $region28: #{channel_attention.2} parent=23 // pred_fallthru
        _
      %p154 = scmp.gt.s32.totalorder %s17, 0
      // Predicated region
      $region29: #{channel_attention.2} parent=23 // pred_check
        %p155 = pneg %p154
      $region30: #{channel_attention.2} parent=23 // pred_check_branch
        %157 = sbr.rel (%p155) target = $region32
      $region31: #{channel_attention.2} parent=23 // pred_region
        %v158 = vld [vmem:[%s142] sm:$0xff]
        %v159 = vadd.f32 %v158, %v147
        %vm160 = vcmask 7168
        %161 = vst.msk [vmem:[%s142] sm:$0xff] %vm160, %v159
      $region32: #{channel_attention.2} parent=23 // pred_fallthru
        _
      %p162 = scmp.lt.s32.totalorder %s16, 1
      %s163 = scalar_select %p162, %s16, 1
      %s164 = smul.addr %s163, 8
      %s165 = scalar_lea.vmem %s1, %s164
      // Predicated region
      $region33: #{channel_attention.2} parent=23 // pred_check
        %p166 = pneg %p70
      $region34: #{channel_attention.2} parent=23 // pred_check_branch
        %168 = sbr.rel (%p166) target = $region36
      $region35: #{channel_attention.2} parent=23 // pred_region
        _
      $region36: #{channel_attention.2} parent=23 // pred_fallthru
        _
    $region24: #{channel_attention.2} parent=5 // pred_fallthru
      _
    %p169 = scmp.le.s32.totalorder 2, %s7
    // Predicated region
    $region37: #{channel_attention.2} parent=5 // pred_check
      %p170 = pneg %p169
    $region38: #{channel_attention.2} parent=5 // pred_check_branch
      %172 = sbr.rel (%p170) target = $region40
    $region39: #{channel_attention.2} parent=5 // pred_region
      %s173 = ssub.s32 %s7, 2
      // Predicated region
      $region41: #{channel_attention.2} parent=39 // pred_check
        %p174 = pneg %p76
      $region42: #{channel_attention.2} parent=39 // pred_check_branch
        %176 = sbr.rel (%p174) target = $region44
      $region43: #{channel_attention.2} parent=39 // pred_region
        %p177 = scmp.lt.s32.totalorder %s18, 1
        %s178 = scalar_select %p177, %s18, 1
        %s179 = smul.addr %s178, 8
        %s180 = scalar_lea.vmem %s1, %s179
      $region44: #{channel_attention.2} parent=39 // pred_fallthru
        _
    $region40: #{channel_attention.2} parent=5 // pred_fallthru
      _
  $region6: #{channel_attention.2} parent=0 // loop_footer
    %s11 = sadd.s32 1, %s7
  $region7: #{channel_attention.2} parent=0 // loop_footer_branch
    %6 = sbr.rel target = $region3
  $region8: #{channel_attention.2} parent=0 // loop_exit
    _

</llo_original>
